<compile_context>
chip_gen: v6e
topology: v6e:2x2x1
jax: 0.10.0
libtpu: 0.0.40
codegen_flags: <defaults>
</compile_context>

<pallas_src>
import functools
import math

import jax
import jax.numpy as jnp
from jax import lax
from jax.experimental import pallas as pl
from jax.experimental.pallas import tpu as pltpu

_LANE = 128
_FOLD_MAX_WF = 2048        # cap on folded block width (elements)
_SINGLE_BLOCK_W = 2048     # widths up to this use one full-width K block
_K_TILE = 1024             # K tile for very wide reductions (>= 512 per perf review)
_TINY_BYTES = 64 * 1024    # below this, a fused XLA reduce beats any kernel launch


def _cdiv(a, b):
    return -(-a // b)


def _round_up(a, b):
    return _cdiv(a, b) * b


def _sublane(itemsize):
    # second-to-last-dim packing multiple: 8 (f32), 16 (bf16), 32 (int8/fp8)
    return 8 * max(1, 4 // itemsize)


@functools.lru_cache(maxsize=None)
def _chip_config():
    """(input_budget, vmem_limit, tm_cap, split_rows) — conservative defaults are safe on
    v5e/v6e (128 MiB VMEM) and v7x (64 MiB); v7x-class chips get bigger blocks + 2-TC split."""
    budget, limit, tm_cap, split = 20 << 20, 32 << 20, 1024, False
    try:
        info = pltpu.get_tpu_info()
        if info.vmem_capacity_bytes <= (64 << 20):
            # v7x-class: ~3.2 TB/s HBM makes the ~0.35us/step overhead proportionally more
            # expensive -> bigger blocks; 2 TCs/chip -> keep >= 2 row tiles when rows allow.
            budget, limit, tm_cap, split = 32 << 20, 48 << 20, 2048, True
    except Exception:  # pragma: no cover - info query unavailable
        pass
    return budget, limit, tm_cap, split


def _pick_tm(rows, block_width, itemsize, budget, tm_cap, split_rows):
    """Largest row tile fitting the (double-buffered) VMEM budget, sublane aligned, never
    exceeding the array's row extent (so only standard partial blocks occur)."""
    sub = _sublane(itemsize)
    if rows < sub:
        return rows                       # single full-extent block (lane/sublane rule: equals dim)
    cap = budget // (2 * block_width * itemsize)
    tm = max(sub, (min(cap, tm_cap) // sub) * sub)
    if split_rows and rows >= 2 * sub:
        tm = min(tm, _round_up(_cdiv(rows, 2), sub))
    tm = min(tm, (rows // sub) * sub)
    return max(sub, tm)


# ---------------------------------------------------------------------------
# Kernel A: small-W fold path.  x block is (tm, wf) lane-dense; the per-row,
# per-segment sums come out of one MXU matmul with a block-diagonal ones matrix.
# ---------------------------------------------------------------------------
def _fold_kernel(x_ref, ones_ref, o_ref, *, scale):
    x = x_ref[...].astype(ones_ref.dtype)
    s = jnp.dot(x, ones_ref[...], preferred_element_type=jnp.float32)
    if scale != 1.0:
        s = s * scale
    o_ref[...] = s.astype(o_ref.dtype)


# ---------------------------------------------------------------------------
# Kernel B: single full-width block per row tile (w <= _SINGLE_BLOCK_W).
# ---------------------------------------------------------------------------
def _rowsum_single_kernel(x_ref, o_ref, *, scale):
    s = jnp.sum(x_ref[...].astype(jnp.float32), axis=-1, keepdims=True)
    if scale != 1.0:
        s = s * scale
    o_ref[...] = s.astype(o_ref.dtype)


# ---------------------------------------------------------------------------
# Kernel C: very wide W.  Grid = (row_tiles, k_tiles); reduction axis last and
# "arbitrary".  (tm, 128) f32 accumulator, per-step VPU lane-group adds, masked
# last K block, single XLU cross-lane reduce + store at k == last.
# ---------------------------------------------------------------------------
def _ktiled_kernel(x_ref, o_ref, acc_ref, *, scale, w, tk):
    k = pl.program_id(1)
    nk = pl.num_programs(1)

    @pl.when(k == 0)
    def _():
        acc_ref[...] = jnp.zeros_like(acc_ref)

    def accumulate(x):
        x = x.astype(jnp.float32)
        for g in range(tk // _LANE):
            acc_ref[...] += x[:, g * _LANE:(g + 1) * _LANE]

    rem = w % tk
    if rem:
        @pl.when(k != nk - 1)
        def _():
            accumulate(x_ref[...])

        @pl.when(k == nk - 1)
        def _():
            col = lax.broadcasted_iota(jnp.int32, x_ref.shape, 1)
            zero = jnp.zeros(x_ref.shape, x_ref.dtype)
            accumulate(jnp.where(col < rem, x_ref[...], zero))
    else:
        accumulate(x_ref[...])

    @pl.when(k == nk - 1)
    def _():
        s = jnp.sum(acc_ref[...], axis=-1, keepdims=True)
        if scale != 1.0:
            s = s * scale
        o_ref[...] = s.astype(o_ref.dtype)


# ---------------------------------------------------------------------------
# Wrappers
# ---------------------------------------------------------------------------
def _reduce_folded(x2d, scale):
    rows, w = x2d.shape
    dtype = x2d.dtype
    itemsize = jnp.dtype(dtype).itemsize
    budget, limit, tm_cap, split = _chip_config()

    base = math.lcm(w, _LANE) // w                    # min rows folded per lane-row
    max_fold = (_FOLD_MAX_WF // (base * w)) * base    # largest fold with wf <= cap
    fold = max_fold
    f = max_fold
    while f >= base:                                  # prefer a fold that divides rows exactly
        if rows % f == 0:
            fold = f
            break
        f -= base

    rows_main = (rows // fold) * fold
    pieces = []
    if rows_main:
        xm = x2d if rows_main == rows else x2d[:rows_main]
        rf = rows_main // fold
        wf = fold * w
        xf = xm.reshape(rf, wf)                       # metadata-only when no slice was taken

        mm_dtype = dtype if dtype in (jnp.dtype(jnp.float32), jnp.dtype(jnp.bfloat16)) else jnp.float32
        seg = jnp.arange(wf, dtype=jnp.int32) // w
        ones_bd = (seg[:, None] == jnp.arange(fold, dtype=jnp.int32)[None, :]).astype(mm_dtype)

        tm = _pick_tm(rf, wf, itemsize, budget, tm_cap, split)
        out = pl.pallas_call(
            functools.partial(_fold_kernel, scale=scale),
            out_shape=jax.ShapeDtypeStruct((rf, fold), dtype),
            grid_spec=pltpu.PrefetchScalarGridSpec(
                num_scalar_prefetch=0,
                grid=(pl.cdiv(rf, tm),),
                in_specs=[
                    pl.BlockSpec((tm, wf), lambda i: (i, 0)),
                    pl.BlockSpec((wf, fold), lambda i: (0, 0)),   # constant block: fetched once
                ],
                out_specs=pl.BlockSpec((tm, fold), lambda i: (i, 0)),
            ),
            compiler_params=pltpu.CompilerParams(
                dimension_semantics=("parallel",),
                vmem_limit_bytes=limit,
            ),
        )(xf, ones_bd)
        # (rf, fold) row-major flatten restores the original row order
        pieces.append(out.reshape(rows_main, 1))

    if rows_main < rows:
        # tail of < fold rows: tiny, plain jnp (avoids any full-input pad/copy)
        tail = jnp.sum(x2d[rows_main:].astype(jnp.float32), axis=-1, keepdims=True)
        if scale != 1.0:
            tail = tail * scale
        pieces.append(tail.astype(dtype))

    return pieces[0] if len(pieces) == 1 else jnp.concatenate(pieces, axis=0)


def _reduce_ktiled(x2d, scale):
    rows, w = x2d.shape
    dtype = x2d.dtype
    itemsize = jnp.dtype(dtype).itemsize
    budget, limit, tm_cap, split = _chip_config()

    if w <= _SINGLE_BLOCK_W:
        # One K block covering the full width: no padding, no masking, one XLU reduce per
        # row tile.  Legal block because the lane dim equals the full array dim even when
        # w is not a multiple of 128.
        tm = _pick_tm(rows, w, itemsize, budget, tm_cap, split)
        return pl.pallas_call(
            functools.partial(_rowsum_single_kernel, scale=scale),
            out_shape=jax.ShapeDtypeStruct((rows, 1), dtype),
            grid_spec=pltpu.PrefetchScalarGridSpec(
                num_scalar_prefetch=0,
                grid=(pl.cdiv(rows, tm),),
                in_specs=[pl.BlockSpec((tm, w), lambda i: (i, 0))],
                out_specs=pl.BlockSpec((tm, 1), lambda i: (i, 0)),
            ),
            compiler_params=pltpu.CompilerParams(
                dimension_semantics=("parallel",),
                vmem_limit_bytes=limit,
            ),
        )(x2d)

    tk = _K_TILE
    tm = _pick_tm(rows, tk, itemsize, budget, tm_cap, split)
    return pl.pallas_call(
        functools.partial(_ktiled_kernel, scale=scale, w=w, tk=tk),
        out_shape=jax.ShapeDtypeStruct((rows, 1), dtype),
        grid_spec=pltpu.PrefetchScalarGridSpec(
            num_scalar_prefetch=0,
            grid=(pl.cdiv(rows, tm), pl.cdiv(w, tk)),
            in_specs=[pl.BlockSpec((tm, tk), lambda i, k: (i, k))],
            out_specs=pl.BlockSpec((tm, 1), lambda i, k: (i, 0)),
            scratch_shapes=[pltpu.VMEM((tm, _LANE), jnp.float32)],
        ),
        compiler_params=pltpu.CompilerParams(
            dimension_semantics=("parallel", "arbitrary"),
            vmem_limit_bytes=limit,
        ),
    )(x2d)


def _reduce_last_dim(x, op):
    lead = x.shape[:-1]
    w = x.shape[-1]
    rows = int(math.prod(lead)) if lead else 1
    dtype = x.dtype
    size_bytes = rows * w * jnp.dtype(dtype).itemsize

    # Tiny or non-floating inputs: a fused XLA reduce beats any Pallas launch and sidesteps
    # f32-accumulation-of-int concerns.
    if (size_bytes < _TINY_BYTES or w == 0 or rows == 0
            or not jnp.issubdtype(dtype, jnp.floating)):
        if op == "mean":
            return jnp.mean(x, axis=-1, keepdims=True).astype(dtype)
        return jnp.sum(x, axis=-1, keepdims=True)

    scale = (1.0 / w) if op == "mean" else 1.0
    x2d = x.reshape(rows, w)
    if w < _LANE and math.lcm(w, _LANE) <= _FOLD_MAX_WF:
        out2d = _reduce_folded(x2d, scale)       # small W: MXU fold, lane-dense output
    else:
        out2d = _reduce_ktiled(x2d, scale)       # W >= 128 (or awkward tiny W): row-sum kernels
    return out2d.reshape(lead + (1,))


class MethodCall:
    """JAX/Pallas analogue of pytorch_symbolic.useful_layers.MethodCall.

    forward(tensor) -> getattr(tensor, method_name)(*args, **kwds)
    Pallas-backed: "sum" / "mean" over the last dim (dim=-1), keepdim True/False.
    """

    def __init__(self, method_name, *args, **kwds):
        self.method_name = method_name
        self.args = args
        self.kwds = kwds

    def __call__(self, tensor):
        if self.method_name in ("sum", "mean"):
            dim = self.kwds.get("dim", self.args[0] if len(self.args) > 0 else None)
            keepdim = self.kwds.get(
                "keepdim", self.args[1] if len(self.args) > 1 else False
            )
            if dim is not None and tensor.ndim > 0 and dim in (-1, tensor.ndim - 1):
                out = _reduce_last_dim(tensor, self.method_name)
                if not keepdim:
                    out = out.reshape(tensor.shape[:-1])
                return out
            # TODO(synk): non-last-dim / full reductions fall back to XLA (no Pallas path).
            fn = jnp.sum if self.method_name == "sum" else jnp.mean
            if dim is None:
                return fn(tensor)
            return fn(tensor, axis=dim, keepdims=bool(keepdim))
        raise NotImplementedError(
            f"MethodCall Pallas dispatch not implemented for {self.method_name!r}"
        )


if __name__ == "__main__":
    key = jax.random.PRNGKey(0)
    k1, k2, k3, k4 = jax.random.split(key, 4)

    # 1) Tiny NCHW input -> fused XLA fallback (launch overhead dominates).
    x_tiny = jax.random.normal(k1, (2, 4, 16, 16), dtype=jnp.float32)
    out = jax.block_until_ready(MethodCall("sum", dim=-1, keepdim=True)(x_tiny))
    ref = jnp.sum(x_tiny, axis=-1, keepdims=True)
    assert out.shape == ref.shape == (2, 4, 16, 1)
    assert jnp.allclose(out, ref, atol=1e-5, rtol=1e-5)

    # 2) Small-W fold/MXU path: W=16 -> fold=128, lane-dense (tm, 128) output blocks.
    x_fold = jax.random.normal(k2, (2, 8, 128, 16), dtype=jnp.float32)
    out = jax.block_until_ready(MethodCall("mean", dim=-1, keepdim=True)(x_fold))
    ref = jnp.mean(x_fold, axis=-1, keepdims=True)
    assert out.shape == ref.shape
    assert jnp.allclose(out, ref, atol=1e-5, rtol=1e-5)

    # 3) Single full-width block path: W=1536 <= 2048, no padding or masking.
    x_mid = jax.random.normal(k3, (2, 16, 1536), dtype=jnp.float32)
    out = jax.block_until_ready(MethodCall("sum", dim=-1, keepdim=False)(x_mid))
    ref = jnp.sum(x_mid, axis=-1)
    assert out.shape == ref.shape
    assert jnp.allclose(out, ref, atol=1e-3, rtol=1e-4)

    # 4) K-tiled path with masked last block: W=2500 > 2048 (tk=1024, remainder 452 lanes).
    x_big = jax.random.normal(k4, (2, 4, 2500), dtype=jnp.float32)
    out = jax.block_until_ready(MethodCall("mean", dim=-1, keepdim=False)(x_big))
    ref = jnp.mean(x_big, axis=-1)
    assert out.shape == ref.shape
    assert jnp.allclose(out, ref, atol=1e-4, rtol=1e-4)

    print("KERNEL_OK")
</pallas_src>

<mosaic_0001>
module attributes {stable_mosaic.version = 11 : i64} {
  func.func @_fold_kernel(%arg0: i32, %arg1: memref<16x2048xf32, #tpu.memory_space<vmem>>, %arg2: memref<2048x128xf32, #tpu.memory_space<vmem>>, %arg3: memref<16x128xf32, #tpu.memory_space<vmem>>) attributes {dimension_semantics = [#tpu.dimension_semantics<parallel>], iteration_bounds = array<i64: 1>, scalar_prefetch = 0 : i64, scratch_operands = 0 : i64, tpu.core_type = #tpu.core_type<tc>, window_params = [{transform_indices = @transform_0, window_bounds = array<i64: 16, 2048>}, {pipeline_mode = #tpu.pipeline_mode<synchronous>, transform_indices = @transform_1, window_bounds = array<i64: 2048, 128>}, {transform_indices = @transform_2, window_bounds = array<i64: 16, 128>}]} {
    %c0 = arith.constant 0 : index
    %c0_0 = arith.constant 0 : index
    %0 = vector.load %arg1[%c0, %c0_0] : memref<16x2048xf32, #tpu.memory_space<vmem>>, vector<16x2048xf32>
    %c0_1 = arith.constant 0 : index
    %c0_2 = arith.constant 0 : index
    %1 = vector.load %arg2[%c0_1, %c0_2] : memref<2048x128xf32, #tpu.memory_space<vmem>>, vector<2048x128xf32>
    %cst = arith.constant dense<0.000000e+00> : vector<16x128xf32>
    %2 = tpu.matmul %0, %1, %cst {dimension_numbers = #tpu.dot_dimension_numbers<[1], [0], [0], [1], [0, 0, 1, 1], [], []>} : vector<16x2048xf32>, vector<2048x128xf32>, vector<16x128xf32> -> vector<16x128xf32>
    %cst_3 = arith.constant 6.250000e-02 : f32
    %3 = vector.broadcast %cst_3 : f32 to vector<16x128xf32>
    %4 = arith.mulf %2, %3 : vector<16x128xf32>
    %c0_4 = arith.constant 0 : index
    %c0_5 = arith.constant 0 : index
    %5 = vector.load %arg3[%c0_4, %c0_5] : memref<16x128xf32, #tpu.memory_space<vmem>>, vector<16x128xf32>
    tpu.vector_store %arg3[%c0_4, %c0_5], %4 {strides = array<i32>} : memref<16x128xf32, #tpu.memory_space<vmem>>, vector<16x128xf32>,
    return
  }
  func.func @transform_0(%arg0: i32) -> (i32, i32) {
    %c0_i32 = arith.constant 0 : i32
    %c0_i32_0 = arith.constant 0 : i32
    return %arg0, %c0_i32 : i32, i32
  }
  func.func @transform_1(%arg0: i32) -> (i32, i32) {
    %c0_i32 = arith.constant 0 : i32
    %c0_i32_0 = arith.constant 0 : i32
    %c0_i32_1 = arith.constant 0 : i32
    return %c0_i32, %c0_i32_0 : i32, i32
  }
  func.func @transform_2(%arg0: i32) -> (i32, i32) {
    %c0_i32 = arith.constant 0 : i32
    %c0_i32_0 = arith.constant 0 : i32
    return %arg0, %c0_i32 : i32, i32
  }
}

</mosaic_0001>

<llo_original>
// kernel: tpu_custom_call.1
$region0: #{tpu_custom_call.1}
  #allocation0 [shape = 'u32[]', space=smem, size = 0x4, offset = 0x4, fixed_abs, tag = 'smem constant byte address 0x4 - core index']
  #allocation1 [shape = 'u32[144,128]{1,0:T(1,128)}', space=vmem, size = 0x12000, scoped, tag = 'internal scratch']
  %s0 = inlined_call_operand.hbm [shape: f32[16,2048], index: 0, kind: input, shape index: {}]
  %s1 = inlined_call_operand.hbm [shape: f32[2048,128], index: 1, kind: input, shape index: {}]
  %s2 = inlined_call_operand.hbm [shape: f32[16,128], index: 2, kind: output, shape index: {}]
  %s3 = sld [smem:[#allocation0]]
  $region26: #{tpu_custom_call.1} parent=0
    _
  %s5 = ssub.s32 1, %s3
  %s6 = scalar_select 0, %s5, %s3
  $region1: #{tpu_custom_call.1} parent=0
    #allocation2 [shape = 'u8[131072]{0}', space=vmem, size = 0x20000, scoped, tag = 'input window, operand 0, single buffered']
    #allocation3 [shape = 's32[1]{0}', space=sflag, size = 0x4, scoped, tag = 'scoped memory for tpu_custom_call.1']
    #allocation4 [shape = 's32[1]{0}', space=sflag, size = 0x4, scoped, tag = 'scoped memory for tpu_custom_call.1']
    #allocation5 [shape = 'u8[1048576]{0}', space=vmem, size = 0x100000, scoped, tag = 'input window, operand 1, single buffered']
    #allocation6 [shape = 's32[1]{0}', space=sflag, size = 0x4, scoped, tag = 'scoped memory for tpu_custom_call.1']
    #allocation7 [shape = 'u8[8192]{0}', space=vmem, size = 0x2000, scoped, tag = 'output window, operand 0, single buffered']
    %7 = vsyncpa [#allocation3], 0
    %8 = vsyncpa [#allocation6], 0
    %9 = vsyncpa [#allocation4], 0
    // Predicated region
    $region2: #{tpu_custom_call.1} parent=1 // pred_check
      _
    $region3: #{tpu_custom_call.1} parent=1 // pred_check_branch
      %11 = sbr.rel (0) target = $region5
    $region4: #{tpu_custom_call.1} parent=1 // pred_region
      %s13 = ssub.s32 4096, 4096
      %14 = vsyncadd [#allocation3], %s13
      %s15 = sshll.u32 [#allocation2], 4
      %s16 = int_to_ptr.vmem [resolvable:$true] %s15
      %21 = dma.hbm_to_vmem [thread:$0]  %s0, 4096, %s16, [#allocation3], 2048, 2048, 128
    $region5: #{tpu_custom_call.1} parent=1 // pred_fallthru
      _
    // Predicated region
    $region6: #{tpu_custom_call.1} parent=1 // pred_check
      _
    $region7: #{tpu_custom_call.1} parent=1 // pred_check_branch
      %23 = sbr.rel (0) target = $region9
    $region8: #{tpu_custom_call.1} parent=1 // pred_region
      %s25 = ssub.s32 32768, 32768
      %26 = vsyncadd [#allocation6], %s25
      %s27 = sshll.u32 [#allocation5], 4
      %s28 = int_to_ptr.vmem [resolvable:$true] %s27
      %33 = dma.hbm_to_vmem [thread:$0]  %s1, 32768, %s28, [#allocation6], 128, 128, 8
    $region9: #{tpu_custom_call.1} parent=1 // pred_fallthru
      _
    // Predicated region
    $region10: #{tpu_custom_call.1} parent=1 // pred_check
      _
    $region11: #{tpu_custom_call.1} parent=1 // pred_check_branch
      %35 = sbr.rel (0) target = $region13
    $region12: #{tpu_custom_call.1} parent=1 // pred_region
      %36 = dma.done [#allocation3], 4096
    $region13: #{tpu_custom_call.1} parent=1 // pred_fallthru
      _
    // Predicated region
    $region14: #{tpu_custom_call.1} parent=1 // pred_check
      _
    $region15: #{tpu_custom_call.1} parent=1 // pred_check_branch
      %38 = sbr.rel (0) target = $region17
    $region16: #{tpu_custom_call.1} parent=1 // pred_region
      %39 = dma.done [#allocation6], 32768
    $region17: #{tpu_custom_call.1} parent=1 // pred_fallthru
      _
    %v40 = vld [vmem:[#allocation2] sm:$0xff]
    %v41 = vld [vmem:[#allocation2 + $0x8] sm:$0xff]
    %v42 = vld [vmem:[#allocation2 + $0x10] sm:$0xff]
    %v43 = vld [vmem:[#allocation2 + $0x18] sm:$0xff]
    %v44 = vld [vmem:[#allocation2 + $0x20] sm:$0xff]
    %v45 = vld [vmem:[#allocation2 + $0x28] sm:$0xff]
    %v46 = vld [vmem:[#allocation2 + $0x30] sm:$0xff]
    %v47 = vld [vmem:[#allocation2 + $0x38] sm:$0xff]
    %v48 = vld [vmem:[#allocation2 + $0x40] sm:$0xff]
    %v49 = vld [vmem:[#allocation2 + $0x48] sm:$0xff]
    %v50 = vld [vmem:[#allocation2 + $0x50] sm:$0xff]
    %v51 = vld [vmem:[#allocation2 + $0x58] sm:$0xff]
    %v52 = vld [vmem:[#allocation2 + $0x60] sm:$0xff]
    %v53 = vld [vmem:[#allocation2 + $0x68] sm:$0xff]
    %v54 = vld [vmem:[#allocation2 + $0x70] sm:$0xff]
    %v55 = vld [vmem:[#allocation2 + $0x78] sm:$0xff]
    %v56 = vld [vmem:[#allocation2 + $0x80] sm:$0xff]
    %v57 = vld [vmem:[#allocation2 + $0x88] sm:$0xff]
    %v58 = vld [vmem:[#allocation2 + $0x90] sm:$0xff]
    %v59 = vld [vmem:[#allocation2 + $0x98] sm:$0xff]
    %v60 = vld [vmem:[#allocation2 + $0xa0] sm:$0xff]
    %v61 = vld [vmem:[#allocation2 + $0xa8] sm:$0xff]
    %v62 = vld [vmem:[#allocation2 + $0xb0] sm:$0xff]
    %v63 = vld [vmem:[#allocation2 + $0xb8] sm:$0xff]
    %v64 = vld [vmem:[#allocation2 + $0xc0] sm:$0xff]
    %v65 = vld [vmem:[#allocation2 + $0xc8] sm:$0xff]
    %v66 = vld [vmem:[#allocation2 + $0xd0] sm:$0xff]
    %v67 = vld [vmem:[#allocation2 + $0xd8] sm:$0xff]
    %v68 = vld [vmem:[#allocation2 + $0xe0] sm:$0xff]
    %v69 = vld [vmem:[#allocation2 + $0xe8] sm:$0xff]
    %v70 = vld [vmem:[#allocation2 + $0xf0] sm:$0xff]
    %v71 = vld [vmem:[#allocation2 + $0xf8] sm:$0xff]
    %v72 = vld [vmem:[#allocation5] sm:$0xff]
    %v73 = vld [vmem:[#allocation5 + $0x8] sm:$0xff]
    %v74 = vld [vmem:[#allocation5 + $0x10] sm:$0xff]
    %v75 = vld [vmem:[#allocation5 + $0x18] sm:$0xff]
    %v76 = vld [vmem:[#allocation5 + $0x20] sm:$0xff]
    %v77 = vld [vmem:[#allocation5 + $0x28] sm:$0xff]
    %v78 = vld [vmem:[#allocation5 + $0x30] sm:$0xff]
    %v79 = vld [vmem:[#allocation5 + $0x38] sm:$0xff]
    %v80 = vld [vmem:[#allocation5 + $0x40] sm:$0xff]
    %v81 = vld [vmem:[#allocation5 + $0x48] sm:$0xff]
    %v82 = vld [vmem:[#allocation5 + $0x50] sm:$0xff]
    %v83 = vld [vmem:[#allocation5 + $0x58] sm:$0xff]
    %v84 = vld [vmem:[#allocation5 + $0x60] sm:$0xff]
    %v85 = vld [vmem:[#allocation5 + $0x68] sm:$0xff]
    %v86 = vld [vmem:[#allocation5 + $0x70] sm:$0xff]
    %v87 = vld [vmem:[#allocation5 + $0x78] sm:$0xff]
    %v88 = vld [vmem:[#allocation5 + $0x80] sm:$0xff]
    %v89 = vld [vmem:[#allocation5 + $0x88] sm:$0xff]
    %v90 = vld [vmem:[#allocation5 + $0x90] sm:$0xff]
    %v91 = vld [vmem:[#allocation5 + $0x98] sm:$0xff]
    %v92 = vld [vmem:[#allocation5 + $0xa0] sm:$0xff]
    %v93 = vld [vmem:[#allocation5 + $0xa8] sm:$0xff]
    %v94 = vld [vmem:[#allocation5 + $0xb0] sm:$0xff]
    %v95 = vld [vmem:[#allocation5 + $0xb8] sm:$0xff]
    %v96 = vld [vmem:[#allocation5 + $0xc0] sm:$0xff]
    %v97 = vld [vmem:[#allocation5 + $0xc8] sm:$0xff]
    %v98 = vld [vmem:[#allocation5 + $0xd0] sm:$0xff]
    %v99 = vld [vmem:[#allocation5 + $0xd8] sm:$0xff]
    %v100 = vld [vmem:[#allocation5 + $0xe0] sm:$0xff]
    %v101 = vld [vmem:[#allocation5 + $0xe8] sm:$0xff]
    %v102 = vld [vmem:[#allocation5 + $0xf0] sm:$0xff]
    %v103 = vld [vmem:[#allocation5 + $0xf8] sm:$0xff]
    %v104 = vld [vmem:[#allocation5 + $0x100] sm:$0xff]
    %v105 = vld [vmem:[#allocation5 + $0x108] sm:$0xff]
    %v106 = vld [vmem:[#allocation5 + $0x110] sm:$0xff]
    %v107 = vld [vmem:[#allocation5 + $0x118] sm:$0xff]
    %v108 = vld [vmem:[#allocation5 + $0x120] sm:$0xff]
    %v109 = vld [vmem:[#allocation5 + $0x128] sm:$0xff]
    %v110 = vld [vmem:[#allocation5 + $0x130] sm:$0xff]
    %v111 = vld [vmem:[#allocation5 + $0x138] sm:$0xff]
    %v112 = vld [vmem:[#allocation5 + $0x140] sm:$0xff]
    %v113 = vld [vmem:[#allocation5 + $0x148] sm:$0xff]
    %v114 = vld [vmem:[#allocation5 + $0x150] sm:$0xff]
    %v115 = vld [vmem:[#allocation5 + $0x158] sm:$0xff]
    %v116 = vld [vmem:[#allocation5 + $0x160] sm:$0xff]
    %v117 = vld [vmem:[#allocation5 + $0x168] sm:$0xff]
    %v118 = vld [vmem:[#allocation5 + $0x170] sm:$0xff]
    %v119 = vld [vmem:[#allocation5 + $0x178] sm:$0xff]
    %v120 = vld [vmem:[#allocation5 + $0x180] sm:$0xff]
    %v121 = vld [vmem:[#allocation5 + $0x188] sm:$0xff]
    %v122 = vld [vmem:[#allocation5 + $0x190] sm:$0xff]
    %v123 = vld [vmem:[#allocation5 + $0x198] sm:$0xff]
    %v124 = vld [vmem:[#allocation5 + $0x1a0] sm:$0xff]
    %v125 = vld [vmem:[#allocation5 + $0x1a8] sm:$0xff]
    %v126 = vld [vmem:[#allocation5 + $0x1b0] sm:$0xff]
    %v127 = vld [vmem:[#allocation5 + $0x1b8] sm:$0xff]
    %v128 = vld [vmem:[#allocation5 + $0x1c0] sm:$0xff]
    %v129 = vld [vmem:[#allocation5 + $0x1c8] sm:$0xff]
    %v130 = vld [vmem:[#allocation5 + $0x1d0] sm:$0xff]
    %v131 = vld [vmem:[#allocation5 + $0x1d8] sm:$0xff]
    %v132 = vld [vmem:[#allocation5 + $0x1e0] sm:$0xff]
    %v133 = vld [vmem:[#allocation5 + $0x1e8] sm:$0xff]
    %v134 = vld [vmem:[#allocation5 + $0x1f0] sm:$0xff]
    %v135 = vld [vmem:[#allocation5 + $0x1f8] sm:$0xff]
    %v136 = vld [vmem:[#allocation5 + $0x200] sm:$0xff]
    %v137 = vld [vmem:[#allocation5 + $0x208] sm:$0xff]
    %v138 = vld [vmem:[#allocation5 + $0x210] sm:$0xff]
    %v139 = vld [vmem:[#allocation5 + $0x218] sm:$0xff]
    %v140 = vld [vmem:[#allocation5 + $0x220] sm:$0xff]
    %v141 = vld [vmem:[#allocation5 + $0x228] sm:$0xff]
    %v142 = vld [vmem:[#allocation5 + $0x230] sm:$0xff]
    %v143 = vld [vmem:[#allocation5 + $0x238] sm:$0xff]
    %v144 = vld [vmem:[#allocation5 + $0x240] sm:$0xff]
    %v145 = vld [vmem:[#allocation5 + $0x248] sm:$0xff]
    %v146 = vld [vmem:[#allocation5 + $0x250] sm:$0xff]
    %v147 = vld [vmem:[#allocation5 + $0x258] sm:$0xff]
    %v148 = vld [vmem:[#allocation5 + $0x260] sm:$0xff]
    %v149 = vld [vmem:[#allocation5 + $0x268] sm:$0xff]
    %v150 = vld [vmem:[#allocation5 + $0x270] sm:$0xff]
    %v151 = vld [vmem:[#allocation5 + $0x278] sm:$0xff]
    %v152 = vld [vmem:[#allocation5 + $0x280] sm:$0xff]
    %v153 = vld [vmem:[#allocation5 + $0x288] sm:$0xff]
    %v154 = vld [vmem:[#allocation5 + $0x290] sm:$0xff]
    %v155 = vld [vmem:[#allocation5 + $0x298] sm:$0xff]
    %v156 = vld [vmem:[#allocation5 + $0x2a0] sm:$0xff]
    %v157 = vld [vmem:[#allocation5 + $0x2a8] sm:$0xff]
    %v158 = vld [vmem:[#allocation5 + $0x2b0] sm:$0xff]
    %v159 = vld [vmem:[#allocation5 + $0x2b8] sm:$0xff]
    %v160 = vld [vmem:[#allocation5 + $0x2c0] sm:$0xff]
    %v161 = vld [vmem:[#allocation5 + $0x2c8] sm:$0xff]
    %v162 = vld [vmem:[#allocation5 + $0x2d0] sm:$0xff]
    %v163 = vld [vmem:[#allocation5 + $0x2d8] sm:$0xff]
    %v164 = vld [vmem:[#allocation5 + $0x2e0] sm:$0xff]
    %v165 = vld [vmem:[#allocation5 + $0x2e8] sm:$0xff]
    %v166 = vld [vmem:[#allocation5 + $0x2f0] sm:$0xff]
    %v167 = vld [vmem:[#allocation5 + $0x2f8] sm:$0xff]
    %v168 = vld [vmem:[#allocation5 + $0x300] sm:$0xff]
    %v169 = vld [vmem:[#allocation5 + $0x308] sm:$0xff]
    %v170 = vld [vmem:[#allocation5 + $0x310] sm:$0xff]
    %v171 = vld [vmem:[#allocation5 + $0x318] sm:$0xff]
    %v172 = vld [vmem:[#allocation5 + $0x320] sm:$0xff]
    %v173 = vld [vmem:[#allocation5 + $0x328] sm:$0xff]
    %v174 = vld [vmem:[#allocation5 + $0x330] sm:$0xff]
    %v175 = vld [vmem:[#allocation5 + $0x338] sm:$0xff]
    %v176 = vld [vmem:[#allocation5 + $0x340] sm:$0xff]
    %v177 = vld [vmem:[#allocation5 + $0x348] sm:$0xff]
    %v178 = vld [vmem:[#allocation5 + $0x350] sm:$0xff]
    %v179 = vld [vmem:[#allocation5 + $0x358] sm:$0xff]
    %v180 = vld [vmem:[#allocation5 + $0x360] sm:$0xff]
    %v181 = vld [vmem:[#allocation5 + $0x368] sm:$0xff]
    %v182 = vld [vmem:[#allocation5 + $0x370] sm:$0xff]
    %v183 = vld [vmem:[#allocation5 + $0x378] sm:$0xff]
    %v184 = vld [vmem:[#allocation5 + $0x380] sm:$0xff]
    %v185 = vld [vmem:[#allocation5 + $0x388] sm:$0xff]
    %v186 = vld [vmem:[#allocation5 + $0x390] sm:$0xff]
    %v187 = vld [vmem:[#allocation5 + $0x398] sm:$0xff]
    %v188 = vld [vmem:[#allocation5 + $0x3a0] sm:$0xff]
    %v189 = vld [vmem:[#allocation5 + $0x3a8] sm:$0xff]
    %v190 = vld [vmem:[#allocation5 + $0x3b0] sm:$0xff]
    %v191 = vld [vmem:[#allocation5 + $0x3b8] sm:$0xff]
    %v192 = vld [vmem:[#allocation5 + $0x3c0] sm:$0xff]
    %v193 = vld [vmem:[#allocation5 + $0x3c8] sm:$0xff]
    %v194 = vld [vmem:[#allocation5 + $0x3d0] sm:$0xff]
    %v195 = vld [vmem:[#allocation5 + $0x3d8] sm:$0xff]
    %v196 = vld [vmem:[#allocation5 + $0x3e0] sm:$0xff]
    %v197 = vld [vmem:[#allocation5 + $0x3e8] sm:$0xff]
    %v198 = vld [vmem:[#allocation5 + $0x3f0] sm:$0xff]
    %v199 = vld [vmem:[#allocation5 + $0x3f8] sm:$0xff]
    %v200 = vld [vmem:[#allocation5 + $0x400] sm:$0xff]
    %v201 = vld [vmem:[#allocation5 + $0x408] sm:$0xff]
    %v202 = vld [vmem:[#allocation5 + $0x410] sm:$0xff]
    %v203 = vld [vmem:[#allocation5 + $0x418] sm:$0xff]
    %v204 = vld [vmem:[#allocation5 + $0x420] sm:$0xff]
    %v205 = vld [vmem:[#allocation5 + $0x428] sm:$0xff]
    %v206 = vld [vmem:[#allocation5 + $0x430] sm:$0xff]
    %v207 = vld [vmem:[#allocation5 + $0x438] sm:$0xff]
    %v208 = vld [vmem:[#allocation5 + $0x440] sm:$0xff]
    %v209 = vld [vmem:[#allocation5 + $0x448] sm:$0xff]
    %v210 = vld [vmem:[#allocation5 + $0x450] sm:$0xff]
    %v211 = vld [vmem:[#allocation5 + $0x458] sm:$0xff]
    %v212 = vld [vmem:[#allocation5 + $0x460] sm:$0xff]
    %v213 = vld [vmem:[#allocation5 + $0x468] sm:$0xff]
    %v214 = vld [vmem:[#allocation5 + $0x470] sm:$0xff]
    %v215 = vld [vmem:[#allocation5 + $0x478] sm:$0xff]
    %v216 = vld [vmem:[#allocation5 + $0x480] sm:$0xff]
    %v217 = vld [vmem:[#allocation5 + $0x488] sm:$0xff]
    %v218 = vld [vmem:[#allocation5 + $0x490] sm:$0xff]
    %v219 = vld [vmem:[#allocation5 + $0x498] sm:$0xff]
    %v220 = vld [vmem:[#allocation5 + $0x4a0] sm:$0xff]
    %v221 = vld [vmem:[#allocation5 + $0x4a8] sm:$0xff]
    %v222 = vld [vmem:[#allocation5 + $0x4b0] sm:$0xff]
    %v223 = vld [vmem:[#allocation5 + $0x4b8] sm:$0xff]
    %v224 = vld [vmem:[#allocation5 + $0x4c0] sm:$0xff]
    %v225 = vld [vmem:[#allocation5 + $0x4c8] sm:$0xff]
    %v226 = vld [vmem:[#allocation5 + $0x4d0] sm:$0xff]
    %v227 = vld [vmem:[#allocation5 + $0x4d8] sm:$0xff]
    %v228 = vld [vmem:[#allocation5 + $0x4e0] sm:$0xff]
    %v229 = vld [vmem:[#allocation5 + $0x4e8] sm:$0xff]
    %v230 = vld [vmem:[#allocation5 + $0x4f0] sm:$0xff]
    %v231 = vld [vmem:[#allocation5 + $0x4f8] sm:$0xff]
    %v232 = vld [vmem:[#allocation5 + $0x500] sm:$0xff]
    %v233 = vld [vmem:[#allocation5 + $0x508] sm:$0xff]
    %v234 = vld [vmem:[#allocation5 + $0x510] sm:$0xff]
    %v235 = vld [vmem:[#allocation5 + $0x518] sm:$0xff]
    %v236 = vld [vmem:[#allocation5 + $0x520] sm:$0xff]
    %v237 = vld [vmem:[#allocation5 + $0x528] sm:$0xff]
    %v238 = vld [vmem:[#allocation5 + $0x530] sm:$0xff]
    %v239 = vld [vmem:[#allocation5 + $0x538] sm:$0xff]
    %v240 = vld [vmem:[#allocation5 + $0x540] sm:$0xff]
    %v241 = vld [vmem:[#allocation5 + $0x548] sm:$0xff]
    %v242 = vld [vmem:[#allocation5 + $0x550] sm:$0xff]
    %v243 = vld [vmem:[#allocation5 + $0x558] sm:$0xff]
    %v244 = vld [vmem:[#allocation5 + $0x560] sm:$0xff]
    %v245 = vld [vmem:[#allocation5 + $0x568] sm:$0xff]
    %v246 = vld [vmem:[#allocation5 + $0x570] sm:$0xff]
    %v247 = vld [vmem:[#allocation5 + $0x578] sm:$0xff]
    %v248 = vld [vmem:[#allocation5 + $0x580] sm:$0xff]
    %v249 = vld [vmem:[#allocation5 + $0x588] sm:$0xff]
    %v250 = vld [vmem:[#allocation5 + $0x590] sm:$0xff]
    %v251 = vld [vmem:[#allocation5 + $0x598] sm:$0xff]
    %v252 = vld [vmem:[#allocation5 + $0x5a0] sm:$0xff]
    %v253 = vld [vmem:[#allocation5 + $0x5a8] sm:$0xff]
    %v254 = vld [vmem:[#allocation5 + $0x5b0] sm:$0xff]
    %v255 = vld [vmem:[#allocation5 + $0x5b8] sm:$0xff]
    %v256 = vld [vmem:[#allocation5 + $0x5c0] sm:$0xff]
    %v257 = vld [vmem:[#allocation5 + $0x5c8] sm:$0xff]
    %v258 = vld [vmem:[#allocation5 + $0x5d0] sm:$0xff]
    %v259 = vld [vmem:[#allocation5 + $0x5d8] sm:$0xff]
    %v260 = vld [vmem:[#allocation5 + $0x5e0] sm:$0xff]
    %v261 = vld [vmem:[#allocation5 + $0x5e8] sm:$0xff]
    %v262 = vld [vmem:[#allocation5 + $0x5f0] sm:$0xff]
    %v263 = vld [vmem:[#allocation5 + $0x5f8] sm:$0xff]
    %v264 = vld [vmem:[#allocation5 + $0x600] sm:$0xff]
    %v265 = vld [vmem:[#allocation5 + $0x608] sm:$0xff]
    %v266 = vld [vmem:[#allocation5 + $0x610] sm:$0xff]
    %v267 = vld [vmem:[#allocation5 + $0x618] sm:$0xff]
    %v268 = vld [vmem:[#allocation5 + $0x620] sm:$0xff]
    %v269 = vld [vmem:[#allocation5 + $0x628] sm:$0xff]
    %v270 = vld [vmem:[#allocation5 + $0x630] sm:$0xff]
    %v271 = vld [vmem:[#allocation5 + $0x638] sm:$0xff]
    %v272 = vld [vmem:[#allocation5 + $0x640] sm:$0xff]
    %v273 = vld [vmem:[#allocation5 + $0x648] sm:$0xff]
    %v274 = vld [vmem:[#allocation5 + $0x650] sm:$0xff]
    %v275 = vld [vmem:[#allocation5 + $0x658] sm:$0xff]
    %v276 = vld [vmem:[#allocation5 + $0x660] sm:$0xff]
    %v277 = vld [vmem:[#allocation5 + $0x668] sm:$0xff]
    %v278 = vld [vmem:[#allocation5 + $0x670] sm:$0xff]
    %v279 = vld [vmem:[#allocation5 + $0x678] sm:$0xff]
    %v280 = vld [vmem:[#allocation5 + $0x680] sm:$0xff]
    %v281 = vld [vmem:[#allocation5 + $0x688] sm:$0xff]
    %v282 = vld [vmem:[#allocation5 + $0x690] sm:$0xff]
    %v283 = vld [vmem:[#allocation5 + $0x698] sm:$0xff]
    %v284 = vld [vmem:[#allocation5 + $0x6a0] sm:$0xff]
    %v285 = vld [vmem:[#allocation5 + $0x6a8] sm:$0xff]
    %v286 = vld [vmem:[#allocation5 + $0x6b0] sm:$0xff]
    %v287 = vld [vmem:[#allocation5 + $0x6b8] sm:$0xff]
    %v288 = vld [vmem:[#allocation5 + $0x6c0] sm:$0xff]
    %v289 = vld [vmem:[#allocation5 + $0x6c8] sm:$0xff]
    %v290 = vld [vmem:[#allocation5 + $0x6d0] sm:$0xff]
    %v291 = vld [vmem:[#allocation5 + $0x6d8] sm:$0xff]
    %v292 = vld [vmem:[#allocation5 + $0x6e0] sm:$0xff]
    %v293 = vld [vmem:[#allocation5 + $0x6e8] sm:$0xff]
    %v294 = vld [vmem:[#allocation5 + $0x6f0] sm:$0xff]
    %v295 = vld [vmem:[#allocation5 + $0x6f8] sm:$0xff]
    %v296 = vld [vmem:[#allocation5 + $0x700] sm:$0xff]
    %v297 = vld [vmem:[#allocation5 + $0x708] sm:$0xff]
    %v298 = vld [vmem:[#allocation5 + $0x710] sm:$0xff]
    %v299 = vld [vmem:[#allocation5 + $0x718] sm:$0xff]
    %v300 = vld [vmem:[#allocation5 + $0x720] sm:$0xff]
    %v301 = vld [vmem:[#allocation5 + $0x728] sm:$0xff]
    %v302 = vld [vmem:[#allocation5 + $0x730] sm:$0xff]
    %v303 = vld [vmem:[#allocation5 + $0x738] sm:$0xff]
    %v304 = vld [vmem:[#allocation5 + $0x740] sm:$0xff]
    %v305 = vld [vmem:[#allocation5 + $0x748] sm:$0xff]
    %v306 = vld [vmem:[#allocation5 + $0x750] sm:$0xff]
    %v307 = vld [vmem:[#allocation5 + $0x758] sm:$0xff]
    %v308 = vld [vmem:[#allocation5 + $0x760] sm:$0xff]
    %v309 = vld [vmem:[#allocation5 + $0x768] sm:$0xff]
    %v310 = vld [vmem:[#allocation5 + $0x770] sm:$0xff]
    %v311 = vld [vmem:[#allocation5 + $0x778] sm:$0xff]
    %v312 = vld [vmem:[#allocation5 + $0x780] sm:$0xff]
    %v313 = vld [vmem:[#allocation5 + $0x788] sm:$0xff]
    %v314 = vld [vmem:[#allocation5 + $0x790] sm:$0xff]
    %v315 = vld [vmem:[#allocation5 + $0x798] sm:$0xff]
    %v316 = vld [vmem:[#allocation5 + $0x7a0] sm:$0xff]
    %v317 = vld [vmem:[#allocation5 + $0x7a8] sm:$0xff]
    %v318 = vld [vmem:[#allocation5 + $0x7b0] sm:$0xff]
    %v319 = vld [vmem:[#allocation5 + $0x7b8] sm:$0xff]
    %v320 = vld [vmem:[#allocation5 + $0x7c0] sm:$0xff]
    %v321 = vld [vmem:[#allocation5 + $0x7c8] sm:$0xff]
    %v322 = vld [vmem:[#allocation5 + $0x7d0] sm:$0xff]
    %v323 = vld [vmem:[#allocation5 + $0x7d8] sm:$0xff]
    %v324 = vld [vmem:[#allocation5 + $0x7e0] sm:$0xff]
    %v325 = vld [vmem:[#allocation5 + $0x7e8] sm:$0xff]
    %v326 = vld [vmem:[#allocation5 + $0x7f0] sm:$0xff]
    %v327 = vld [vmem:[#allocation5 + $0x7f8] sm:$0xff]
    %328 = vmatprep.subr.mxu0 0.0
    %329 = vmatpush1.msra.mxu0 %v87
    %330 = vmatprep.subr.mxu0 0.0
    %331 = vmatpush1.msra.mxu0 %v86
    %332 = vmatprep.subr.mxu0 0.0
    %333 = vmatpush1.msra.mxu0 %v85
    %334 = vmatprep.subr.mxu0 0.0
    %335 = vmatpush1.msra.mxu0 %v84
    %336 = vmatprep.subr.mxu0 0.0
    %337 = vmatpush1.msra.mxu0 %v83
    %338 = vmatprep.subr.mxu0 0.0
    %339 = vmatpush1.msra.mxu0 %v82
    %340 = vmatprep.subr.mxu0 0.0
    %341 = vmatpush1.msra.mxu0 %v81
    %342 = vmatprep.subr.mxu0 0.0
    %343 = vmatpush1.msra.mxu0 %v80
    %344 = vmatprep.subr.mxu0 0.0
    %345 = vmatpush1.msra.mxu0 %v79
    %346 = vmatprep.subr.mxu0 0.0
    %347 = vmatpush1.msra.mxu0 %v78
    %348 = vmatprep.subr.mxu0 0.0
    %349 = vmatpush1.msra.mxu0 %v77
    %350 = vmatprep.subr.mxu0 0.0
    %351 = vmatpush1.msra.mxu0 %v76
    %352 = vmatprep.subr.mxu0 0.0
    %353 = vmatpush1.msra.mxu0 %v75
    %354 = vmatprep.subr.mxu0 0.0
    %355 = vmatpush1.msra.mxu0 %v74
    %356 = vmatprep.subr.mxu0 0.0
    %357 = vmatpush1.msra.mxu0 %v73
    %358 = vmatprep.subr.mxu0 0.0
    %359 = vmatpush1.msra.mxu0 %v72
    %360 = vmatprep.subr.mxu0 0.0
    %361 = vmatpush2.msra.mxu0 %v103
    %362 = vmatprep.subr.mxu0 0.0
    %363 = vmatpush2.msra.mxu0 %v102
    %364 = vmatprep.subr.mxu0 0.0
    %365 = vmatpush2.msra.mxu0 %v101
    %366 = vmatprep.subr.mxu0 0.0
    %367 = vmatpush2.msra.mxu0 %v100
    %368 = vmatprep.subr.mxu0 0.0
    %369 = vmatpush2.msra.mxu0 %v99
    %370 = vmatprep.subr.mxu0 0.0
    %371 = vmatpush2.msra.mxu0 %v98
    %372 = vmatprep.subr.mxu0 0.0
    %373 = vmatpush2.msra.mxu0 %v97
    %374 = vmatprep.subr.mxu0 0.0
    %375 = vmatpush2.msra.mxu0 %v96
    %376 = vmatprep.subr.mxu0 0.0
    %377 = vmatpush2.msra.mxu0 %v95
    %378 = vmatprep.subr.mxu0 0.0
    %379 = vmatpush2.msra.mxu0 %v94
    %380 = vmatprep.subr.mxu0 0.0
    %381 = vmatpush2.msra.mxu0 %v93
    %382 = vmatprep.subr.mxu0 0.0
    %383 = vmatpush2.msra.mxu0 %v92
    %384 = vmatprep.subr.mxu0 0.0
    %385 = vmatpush2.msra.mxu0 %v91
    %386 = vmatprep.subr.mxu0 0.0
    %387 = vmatpush2.msra.mxu0 %v90
    %388 = vmatprep.subr.mxu0 0.0
    %389 = vmatpush2.msra.mxu0 %v89
    %390 = vmatprep.subr.mxu0 0.0
    %391 = vmatpush2.msra.mxu0 %v88
    %392 = vmatprep.mubr.f32.mxu0 %v41
    %393 = vmatmul.mubr.f32.gmra.mxu0 %v40
    %v394 = vpop.f32.mrf.mxu0
    %v395 = vadd.f32 0.0, %v394
    %v396 = vpop.f32.mrf.mxu0
    %397 = vmatprep.mubr.f32.mxu0 %v57
    %398 = vmatmul.mubr.f32.gmra.mxu0 %v56
    %v399 = vpop.f32.mrf.mxu0
    %v400 = vadd.f32 0.0, %v399
    %v401 = vpop.f32.mrf.mxu0
    %402 = vdwg.mxu0
    %403 = vmatprep.subr.mxu0 0.0
    %404 = vmatpush1.msra.mxu0 %v119
    %405 = vmatprep.subr.mxu0 0.0
    %406 = vmatpush1.msra.mxu0 %v118
    %407 = vmatprep.subr.mxu0 0.0
    %408 = vmatpush1.msra.mxu0 %v117
    %409 = vmatprep.subr.mxu0 0.0
    %410 = vmatpush1.msra.mxu0 %v116
    %411 = vmatprep.subr.mxu0 0.0
    %412 = vmatpush1.msra.mxu0 %v115
    %413 = vmatprep.subr.mxu0 0.0
    %414 = vmatpush1.msra.mxu0 %v114
    %415 = vmatprep.subr.mxu0 0.0
    %416 = vmatpush1.msra.mxu0 %v113
    %417 = vmatprep.subr.mxu0 0.0
    %418 = vmatpush1.msra.mxu0 %v112
    %419 = vmatprep.subr.mxu0 0.0
    %420 = vmatpush1.msra.mxu0 %v111
    %421 = vmatprep.subr.mxu0 0.0
    %422 = vmatpush1.msra.mxu0 %v110
    %423 = vmatprep.subr.mxu0 0.0
    %424 = vmatpush1.msra.mxu0 %v109
    %425 = vmatprep.subr.mxu0 0.0
    %426 = vmatpush1.msra.mxu0 %v108
    %427 = vmatprep.subr.mxu0 0.0
    %428 = vmatpush1.msra.mxu0 %v107
    %429 = vmatprep.subr.mxu0 0.0
    %430 = vmatpush1.msra.mxu0 %v106
    %431 = vmatprep.subr.mxu0 0.0
    %432 = vmatpush1.msra.mxu0 %v105
    %433 = vmatprep.subr.mxu0 0.0
    %434 = vmatpush1.msra.mxu0 %v104
    %435 = vmatprep.subr.mxu0 0.0
    %436 = vmatpush2.msra.mxu0 %v135
    %437 = vmatprep.subr.mxu0 0.0
    %438 = vmatpush2.msra.mxu0 %v134
    %439 = vmatprep.subr.mxu0 0.0
    %440 = vmatpush2.msra.mxu0 %v133
    %441 = vmatprep.subr.mxu0 0.0
    %442 = vmatpush2.msra.mxu0 %v132
    %443 = vmatprep.subr.mxu0 0.0
    %444 = vmatpush2.msra.mxu0 %v131
    %445 = vmatprep.subr.mxu0 0.0
    %446 = vmatpush2.msra.mxu0 %v130
    %447 = vmatprep.subr.mxu0 0.0
    %448 = vmatpush2.msra.mxu0 %v129
    %449 = vmatprep.subr.mxu0 0.0
    %450 = vmatpush2.msra.mxu0 %v128
    %451 = vmatprep.subr.mxu0 0.0
    %452 = vmatpush2.msra.mxu0 %v127
    %453 = vmatprep.subr.mxu0 0.0
    %454 = vmatpush2.msra.mxu0 %v126
    %455 = vmatprep.subr.mxu0 0.0
    %456 = vmatpush2.msra.mxu0 %v125
    %457 = vmatprep.subr.mxu0 0.0
    %458 = vmatpush2.msra.mxu0 %v124
    %459 = vmatprep.subr.mxu0 0.0
    %460 = vmatpush2.msra.mxu0 %v123
    %461 = vmatprep.subr.mxu0 0.0
    %462 = vmatpush2.msra.mxu0 %v122
    %463 = vmatprep.subr.mxu0 0.0
    %464 = vmatpush2.msra.mxu0 %v121
    %465 = vmatprep.subr.mxu0 0.0
    %466 = vmatpush2.msra.mxu0 %v120
    %467 = vmatprep.mubr.f32.mxu0 %v43
    %468 = vmatmul.mubr.f32.gmra.mxu0 %v42
    %v469 = vpop.f32.mrf.mxu0
    %v470 = vadd.f32 %v395, %v469
    %v471 = vpop.f32.mrf.mxu0
    %472 = vmatprep.mubr.f32.mxu0 %v59
    %473 = vmatmul.mubr.f32.gmra.mxu0 %v58
    %v474 = vpop.f32.mrf.mxu0
    %v475 = vadd.f32 %v400, %v474
    %v476 = vpop.f32.mrf.mxu0
    %477 = vdwg.mxu0
    %478 = vmatprep.subr.mxu0 0.0
    %479 = vmatpush1.msra.mxu0 %v151
    %480 = vmatprep.subr.mxu0 0.0
    %481 = vmatpush1.msra.mxu0 %v150
    %482 = vmatprep.subr.mxu0 0.0
    %483 = vmatpush1.msra.mxu0 %v149
    %484 = vmatprep.subr.mxu0 0.0
    %485 = vmatpush1.msra.mxu0 %v148
    %486 = vmatprep.subr.mxu0 0.0
    %487 = vmatpush1.msra.mxu0 %v147
    %488 = vmatprep.subr.mxu0 0.0
    %489 = vmatpush1.msra.mxu0 %v146
    %490 = vmatprep.subr.mxu0 0.0
    %491 = vmatpush1.msra.mxu0 %v145
    %492 = vmatprep.subr.mxu0 0.0
    %493 = vmatpush1.msra.mxu0 %v144
    %494 = vmatprep.subr.mxu0 0.0
    %495 = vmatpush1.msra.mxu0 %v143
    %496 = vmatprep.subr.mxu0 0.0
    %497 = vmatpush1.msra.mxu0 %v142
    %498 = vmatprep.subr.mxu0 0.0
    %499 = vmatpush1.msra.mxu0 %v141
    %500 = vmatprep.subr.mxu0 0.0
    %501 = vmatpush1.msra.mxu0 %v140
    %502 = vmatprep.subr.mxu0 0.0
    %503 = vmatpush1.msra.mxu0 %v139
    %504 = vmatprep.subr.mxu0 0.0
    %505 = vmatpush1.msra.mxu0 %v138
    %506 = vmatprep.subr.mxu0 0.0
    %507 = vmatpush1.msra.mxu0 %v137
    %508 = vmatprep.subr.mxu0 0.0
    %509 = vmatpush1.msra.mxu0 %v136
    %510 = vmatprep.subr.mxu0 0.0
    %511 = vmatpush2.msra.mxu0 %v167
    %512 = vmatprep.subr.mxu0 0.0
    %513 = vmatpush2.msra.mxu0 %v166
    %514 = vmatprep.subr.mxu0 0.0
    %515 = vmatpush2.msra.mxu0 %v165
    %516 = vmatprep.subr.mxu0 0.0
    %517 = vmatpush2.msra.mxu0 %v164
    %518 = vmatprep.subr.mxu0 0.0
    %519 = vmatpush2.msra.mxu0 %v163
    %520 = vmatprep.subr.mxu0 0.0
    %521 = vmatpush2.msra.mxu0 %v162
    %522 = vmatprep.subr.mxu0 0.0
    %523 = vmatpush2.msra.mxu0 %v161
    %524 = vmatprep.subr.mxu0 0.0
    %525 = vmatpush2.msra.mxu0 %v160
    %526 = vmatprep.subr.mxu0 0.0
    %527 = vmatpush2.msra.mxu0 %v159
    %528 = vmatprep.subr.mxu0 0.0
    %529 = vmatpush2.msra.mxu0 %v158
    %530 = vmatprep.subr.mxu0 0.0
    %531 = vmatpush2.msra.mxu0 %v157
    %532 = vmatprep.subr.mxu0 0.0
    %533 = vmatpush2.msra.mxu0 %v156
    %534 = vmatprep.subr.mxu0 0.0
    %535 = vmatpush2.msra.mxu0 %v155
    %536 = vmatprep.subr.mxu0 0.0
    %537 = vmatpush2.msra.mxu0 %v154
    %538 = vmatprep.subr.mxu0 0.0
    %539 = vmatpush2.msra.mxu0 %v153
    %540 = vmatprep.subr.mxu0 0.0
    %541 = vmatpush2.msra.mxu0 %v152
    %542 = vmatprep.mubr.f32.mxu0 %v45
    %543 = vmatmul.mubr.f32.gmra.mxu0 %v44
    %v544 = vpop.f32.mrf.mxu0
    %v545 = vadd.f32 %v470, %v544
    %v546 = vpop.f32.mrf.mxu0
    %547 = vmatprep.mubr.f32.mxu0 %v61
    %548 = vmatmul.mubr.f32.gmra.mxu0 %v60
    %v549 = vpop.f32.mrf.mxu0
    %v550 = vadd.f32 %v475, %v549
    %v551 = vpop.f32.mrf.mxu0
    %552 = vdwg.mxu0
    %553 = vmatprep.subr.mxu0 0.0
    %554 = vmatpush1.msra.mxu0 %v183
    %555 = vmatprep.subr.mxu0 0.0
    %556 = vmatpush1.msra.mxu0 %v182
    %557 = vmatprep.subr.mxu0 0.0
    %558 = vmatpush1.msra.mxu0 %v181
    %559 = vmatprep.subr.mxu0 0.0
    %560 = vmatpush1.msra.mxu0 %v180
    %561 = vmatprep.subr.mxu0 0.0
    %562 = vmatpush1.msra.mxu0 %v179
    %563 = vmatprep.subr.mxu0 0.0
    %564 = vmatpush1.msra.mxu0 %v178
    %565 = vmatprep.subr.mxu0 0.0
    %566 = vmatpush1.msra.mxu0 %v177
    %567 = vmatprep.subr.mxu0 0.0
    %568 = vmatpush1.msra.mxu0 %v176
    %569 = vmatprep.subr.mxu0 0.0
    %570 = vmatpush1.msra.mxu0 %v175
    %571 = vmatprep.subr.mxu0 0.0
    %572 = vmatpush1.msra.mxu0 %v174
    %573 = vmatprep.subr.mxu0 0.0
    %574 = vmatpush1.msra.mxu0 %v173
    %575 = vmatprep.subr.mxu0 0.0
    %576 = vmatpush1.msra.mxu0 %v172
    %577 = vmatprep.subr.mxu0 0.0
    %578 = vmatpush1.msra.mxu0 %v171
    %579 = vmatprep.subr.mxu0 0.0
    %580 = vmatpush1.msra.mxu0 %v170
    %581 = vmatprep.subr.mxu0 0.0
    %582 = vmatpush1.msra.mxu0 %v169
    %583 = vmatprep.subr.mxu0 0.0
    %584 = vmatpush1.msra.mxu0 %v168
    %585 = vmatprep.subr.mxu0 0.0
    %586 = vmatpush2.msra.mxu0 %v199
    %587 = vmatprep.subr.mxu0 0.0
    %588 = vmatpush2.msra.mxu0 %v198
    %589 = vmatprep.subr.mxu0 0.0
    %590 = vmatpush2.msra.mxu0 %v197
    %591 = vmatprep.subr.mxu0 0.0
    %592 = vmatpush2.msra.mxu0 %v196
    %593 = vmatprep.subr.mxu0 0.0
    %594 = vmatpush2.msra.mxu0 %v195
    %595 = vmatprep.subr.mxu0 0.0
    %596 = vmatpush2.msra.mxu0 %v194
    %597 = vmatprep.subr.mxu0 0.0
    %598 = vmatpush2.msra.mxu0 %v193
    %599 = vmatprep.subr.mxu0 0.0
    %600 = vmatpush2.msra.mxu0 %v192
    %601 = vmatprep.subr.mxu0 0.0
    %602 = vmatpush2.msra.mxu0 %v191
    %603 = vmatprep.subr.mxu0 0.0
    %604 = vmatpush2.msra.mxu0 %v190
    %605 = vmatprep.subr.mxu0 0.0
    %606 = vmatpush2.msra.mxu0 %v189
    %607 = vmatprep.subr.mxu0 0.0
    %608 = vmatpush2.msra.mxu0 %v188
    %609 = vmatprep.subr.mxu0 0.0
    %610 = vmatpush2.msra.mxu0 %v187
    %611 = vmatprep.subr.mxu0 0.0
    %612 = vmatpush2.msra.mxu0 %v186
    %613 = vmatprep.subr.mxu0 0.0
    %614 = vmatpush2.msra.mxu0 %v185
    %615 = vmatprep.subr.mxu0 0.0
    %616 = vmatpush2.msra.mxu0 %v184
    %617 = vmatprep.mubr.f32.mxu0 %v47
    %618 = vmatmul.mubr.f32.gmra.mxu0 %v46
    %v619 = vpop.f32.mrf.mxu0
    %v620 = vadd.f32 %v545, %v619
    %v621 = vpop.f32.mrf.mxu0
    %622 = vmatprep.mubr.f32.mxu0 %v63
    %623 = vmatmul.mubr.f32.gmra.mxu0 %v62
    %v624 = vpop.f32.mrf.mxu0
    %v625 = vadd.f32 %v550, %v624
    %v626 = vpop.f32.mrf.mxu0
    %627 = vdwg.mxu0
    %628 = vmatprep.subr.mxu0 0.0
    %629 = vmatpush1.msra.mxu0 %v215
    %630 = vmatprep.subr.mxu0 0.0
    %631 = vmatpush1.msra.mxu0 %v214
    %632 = vmatprep.subr.mxu0 0.0
    %633 = vmatpush1.msra.mxu0 %v213
    %634 = vmatprep.subr.mxu0 0.0
    %635 = vmatpush1.msra.mxu0 %v212
    %636 = vmatprep.subr.mxu0 0.0
    %637 = vmatpush1.msra.mxu0 %v211
    %638 = vmatprep.subr.mxu0 0.0
    %639 = vmatpush1.msra.mxu0 %v210
    %640 = vmatprep.subr.mxu0 0.0
    %641 = vmatpush1.msra.mxu0 %v209
    %642 = vmatprep.subr.mxu0 0.0
    %643 = vmatpush1.msra.mxu0 %v208
    %644 = vmatprep.subr.mxu0 0.0
    %645 = vmatpush1.msra.mxu0 %v207
    %646 = vmatprep.subr.mxu0 0.0
    %647 = vmatpush1.msra.mxu0 %v206
    %648 = vmatprep.subr.mxu0 0.0
    %649 = vmatpush1.msra.mxu0 %v205
    %650 = vmatprep.subr.mxu0 0.0
    %651 = vmatpush1.msra.mxu0 %v204
    %652 = vmatprep.subr.mxu0 0.0
    %653 = vmatpush1.msra.mxu0 %v203
    %654 = vmatprep.subr.mxu0 0.0
    %655 = vmatpush1.msra.mxu0 %v202
    %656 = vmatprep.subr.mxu0 0.0
    %657 = vmatpush1.msra.mxu0 %v201
    %658 = vmatprep.subr.mxu0 0.0
    %659 = vmatpush1.msra.mxu0 %v200
    %660 = vmatprep.subr.mxu0 0.0
    %661 = vmatpush2.msra.mxu0 %v231
    %662 = vmatprep.subr.mxu0 0.0
    %663 = vmatpush2.msra.mxu0 %v230
    %664 = vmatprep.subr.mxu0 0.0
    %665 = vmatpush2.msra.mxu0 %v229
    %666 = vmatprep.subr.mxu0 0.0
    %667 = vmatpush2.msra.mxu0 %v228
    %668 = vmatprep.subr.mxu0 0.0
    %669 = vmatpush2.msra.mxu0 %v227
    %670 = vmatprep.subr.mxu0 0.0
    %671 = vmatpush2.msra.mxu0 %v226
    %672 = vmatprep.subr.mxu0 0.0
    %673 = vmatpush2.msra.mxu0 %v225
    %674 = vmatprep.subr.mxu0 0.0
    %675 = vmatpush2.msra.mxu0 %v224
    %676 = vmatprep.subr.mxu0 0.0
    %677 = vmatpush2.msra.mxu0 %v223
    %678 = vmatprep.subr.mxu0 0.0
    %679 = vmatpush2.msra.mxu0 %v222
    %680 = vmatprep.subr.mxu0 0.0
    %681 = vmatpush2.msra.mxu0 %v221
    %682 = vmatprep.subr.mxu0 0.0
    %683 = vmatpush2.msra.mxu0 %v220
    %684 = vmatprep.subr.mxu0 0.0
    %685 = vmatpush2.msra.mxu0 %v219
    %686 = vmatprep.subr.mxu0 0.0
    %687 = vmatpush2.msra.mxu0 %v218
    %688 = vmatprep.subr.mxu0 0.0
    %689 = vmatpush2.msra.mxu0 %v217
    %690 = vmatprep.subr.mxu0 0.0
    %691 = vmatpush2.msra.mxu0 %v216
    %692 = vmatprep.mubr.f32.mxu0 %v49
    %693 = vmatmul.mubr.f32.gmra.mxu0 %v48
    %v694 = vpop.f32.mrf.mxu0
    %v695 = vadd.f32 %v620, %v694
    %v696 = vpop.f32.mrf.mxu0
    %697 = vmatprep.mubr.f32.mxu0 %v65
    %698 = vmatmul.mubr.f32.gmra.mxu0 %v64
    %v699 = vpop.f32.mrf.mxu0
    %v700 = vadd.f32 %v625, %v699
    %v701 = vpop.f32.mrf.mxu0
    %702 = vdwg.mxu0
    %703 = vmatprep.subr.mxu0 0.0
    %704 = vmatpush1.msra.mxu0 %v247
    %705 = vmatprep.subr.mxu0 0.0
    %706 = vmatpush1.msra.mxu0 %v246
    %707 = vmatprep.subr.mxu0 0.0
    %708 = vmatpush1.msra.mxu0 %v245
    %709 = vmatprep.subr.mxu0 0.0
    %710 = vmatpush1.msra.mxu0 %v244
    %711 = vmatprep.subr.mxu0 0.0
    %712 = vmatpush1.msra.mxu0 %v243
    %713 = vmatprep.subr.mxu0 0.0
    %714 = vmatpush1.msra.mxu0 %v242
    %715 = vmatprep.subr.mxu0 0.0
    %716 = vmatpush1.msra.mxu0 %v241
    %717 = vmatprep.subr.mxu0 0.0
    %718 = vmatpush1.msra.mxu0 %v240
    %719 = vmatprep.subr.mxu0 0.0
    %720 = vmatpush1.msra.mxu0 %v239
    %721 = vmatprep.subr.mxu0 0.0
    %722 = vmatpush1.msra.mxu0 %v238
    %723 = vmatprep.subr.mxu0 0.0
    %724 = vmatpush1.msra.mxu0 %v237
    %725 = vmatprep.subr.mxu0 0.0
    %726 = vmatpush1.msra.mxu0 %v236
    %727 = vmatprep.subr.mxu0 0.0
    %728 = vmatpush1.msra.mxu0 %v235
    %729 = vmatprep.subr.mxu0 0.0
    %730 = vmatpush1.msra.mxu0 %v234
    %731 = vmatprep.subr.mxu0 0.0
    %732 = vmatpush1.msra.mxu0 %v233
    %733 = vmatprep.subr.mxu0 0.0
    %734 = vmatpush1.msra.mxu0 %v232
    %735 = vmatprep.subr.mxu0 0.0
    %736 = vmatpush2.msra.mxu0 %v263
    %737 = vmatprep.subr.mxu0 0.0
    %738 = vmatpush2.msra.mxu0 %v262
    %739 = vmatprep.subr.mxu0 0.0
    %740 = vmatpush2.msra.mxu0 %v261
    %741 = vmatprep.subr.mxu0 0.0
    %742 = vmatpush2.msra.mxu0 %v260
    %743 = vmatprep.subr.mxu0 0.0
    %744 = vmatpush2.msra.mxu0 %v259
    %745 = vmatprep.subr.mxu0 0.0
    %746 = vmatpush2.msra.mxu0 %v258
    %747 = vmatprep.subr.mxu0 0.0
    %748 = vmatpush2.msra.mxu0 %v257
    %749 = vmatprep.subr.mxu0 0.0
    %750 = vmatpush2.msra.mxu0 %v256
    %751 = vmatprep.subr.mxu0 0.0
    %752 = vmatpush2.msra.mxu0 %v255
    %753 = vmatprep.subr.mxu0 0.0
    %754 = vmatpush2.msra.mxu0 %v254
    %755 = vmatprep.subr.mxu0 0.0
    %756 = vmatpush2.msra.mxu0 %v253
    %757 = vmatprep.subr.mxu0 0.0
    %758 = vmatpush2.msra.mxu0 %v252
    %759 = vmatprep.subr.mxu0 0.0
    %760 = vmatpush2.msra.mxu0 %v251
    %761 = vmatprep.subr.mxu0 0.0
    %762 = vmatpush2.msra.mxu0 %v250
    %763 = vmatprep.subr.mxu0 0.0
    %764 = vmatpush2.msra.mxu0 %v249
    %765 = vmatprep.subr.mxu0 0.0
    %766 = vmatpush2.msra.mxu0 %v248
    %767 = vmatprep.mubr.f32.mxu0 %v51
    %768 = vmatmul.mubr.f32.gmra.mxu0 %v50
    %v769 = vpop.f32.mrf.mxu0
    %v770 = vadd.f32 %v695, %v769
    %v771 = vpop.f32.mrf.mxu0
    %772 = vmatprep.mubr.f32.mxu0 %v67
    %773 = vmatmul.mubr.f32.gmra.mxu0 %v66
    %v774 = vpop.f32.mrf.mxu0
    %v775 = vadd.f32 %v700, %v774
    %v776 = vpop.f32.mrf.mxu0
    %777 = vdwg.mxu0
    %778 = vmatprep.subr.mxu0 0.0
    %779 = vmatpush1.msra.mxu0 %v279
    %780 = vmatprep.subr.mxu0 0.0
    %781 = vmatpush1.msra.mxu0 %v278
    %782 = vmatprep.subr.mxu0 0.0
    %783 = vmatpush1.msra.mxu0 %v277
    %784 = vmatprep.subr.mxu0 0.0
    %785 = vmatpush1.msra.mxu0 %v276
    %786 = vmatprep.subr.mxu0 0.0
    %787 = vmatpush1.msra.mxu0 %v275
    %788 = vmatprep.subr.mxu0 0.0
    %789 = vmatpush1.msra.mxu0 %v274
    %790 = vmatprep.subr.mxu0 0.0
    %791 = vmatpush1.msra.mxu0 %v273
    %792 = vmatprep.subr.mxu0 0.0
    %793 = vmatpush1.msra.mxu0 %v272
    %794 = vmatprep.subr.mxu0 0.0
    %795 = vmatpush1.msra.mxu0 %v271
    %796 = vmatprep.subr.mxu0 0.0
    %797 = vmatpush1.msra.mxu0 %v270
    %798 = vmatprep.subr.mxu0 0.0
    %799 = vmatpush1.msra.mxu0 %v269
    %800 = vmatprep.subr.mxu0 0.0
    %801 = vmatpush1.msra.mxu0 %v268
    %802 = vmatprep.subr.mxu0 0.0
    %803 = vmatpush1.msra.mxu0 %v267
    %804 = vmatprep.subr.mxu0 0.0
    %805 = vmatpush1.msra.mxu0 %v266
    %806 = vmatprep.subr.mxu0 0.0
    %807 = vmatpush1.msra.mxu0 %v265
    %808 = vmatprep.subr.mxu0 0.0
    %809 = vmatpush1.msra.mxu0 %v264
    %810 = vmatprep.subr.mxu0 0.0
    %811 = vmatpush2.msra.mxu0 %v295
    %812 = vmatprep.subr.mxu0 0.0
    %813 = vmatpush2.msra.mxu0 %v294
    %814 = vmatprep.subr.mxu0 0.0
    %815 = vmatpush2.msra.mxu0 %v293
    %816 = vmatprep.subr.mxu0 0.0
    %817 = vmatpush2.msra.mxu0 %v292
    %818 = vmatprep.subr.mxu0 0.0
    %819 = vmatpush2.msra.mxu0 %v291
    %820 = vmatprep.subr.mxu0 0.0
    %821 = vmatpush2.msra.mxu0 %v290
    %822 = vmatprep.subr.mxu0 0.0
    %823 = vmatpush2.msra.mxu0 %v289
    %824 = vmatprep.subr.mxu0 0.0
    %825 = vmatpush2.msra.mxu0 %v288
    %826 = vmatprep.subr.mxu0 0.0
    %827 = vmatpush2.msra.mxu0 %v287
    %828 = vmatprep.subr.mxu0 0.0
    %829 = vmatpush2.msra.mxu0 %v286
    %830 = vmatprep.subr.mxu0 0.0
    %831 = vmatpush2.msra.mxu0 %v285
    %832 = vmatprep.subr.mxu0 0.0
    %833 = vmatpush2.msra.mxu0 %v284
    %834 = vmatprep.subr.mxu0 0.0
    %835 = vmatpush2.msra.mxu0 %v283
    %836 = vmatprep.subr.mxu0 0.0
    %837 = vmatpush2.msra.mxu0 %v282
    %838 = vmatprep.subr.mxu0 0.0
    %839 = vmatpush2.msra.mxu0 %v281
    %840 = vmatprep.subr.mxu0 0.0
    %841 = vmatpush2.msra.mxu0 %v280
    %842 = vmatprep.mubr.f32.mxu0 %v53
    %843 = vmatmul.mubr.f32.gmra.mxu0 %v52
    %v844 = vpop.f32.mrf.mxu0
    %v845 = vadd.f32 %v770, %v844
    %v846 = vpop.f32.mrf.mxu0
    %847 = vmatprep.mubr.f32.mxu0 %v69
    %848 = vmatmul.mubr.f32.gmra.mxu0 %v68
    %v849 = vpop.f32.mrf.mxu0
    %v850 = vadd.f32 %v775, %v849
    %v851 = vpop.f32.mrf.mxu0
    %852 = vdwg.mxu0
    %853 = vmatprep.subr.mxu0 0.0
    %854 = vmatpush1.msra.mxu0 %v311
    %855 = vmatprep.subr.mxu0 0.0
    %856 = vmatpush1.msra.mxu0 %v310
    %857 = vmatprep.subr.mxu0 0.0
    %858 = vmatpush1.msra.mxu0 %v309
    %859 = vmatprep.subr.mxu0 0.0
    %860 = vmatpush1.msra.mxu0 %v308
    %861 = vmatprep.subr.mxu0 0.0
    %862 = vmatpush1.msra.mxu0 %v307
    %863 = vmatprep.subr.mxu0 0.0
    %864 = vmatpush1.msra.mxu0 %v306
    %865 = vmatprep.subr.mxu0 0.0
    %866 = vmatpush1.msra.mxu0 %v305
    %867 = vmatprep.subr.mxu0 0.0
    %868 = vmatpush1.msra.mxu0 %v304
    %869 = vmatprep.subr.mxu0 0.0
    %870 = vmatpush1.msra.mxu0 %v303
    %871 = vmatprep.subr.mxu0 0.0
    %872 = vmatpush1.msra.mxu0 %v302
    %873 = vmatprep.subr.mxu0 0.0
    %874 = vmatpush1.msra.mxu0 %v301
    %875 = vmatprep.subr.mxu0 0.0
    %876 = vmatpush1.msra.mxu0 %v300
    %877 = vmatprep.subr.mxu0 0.0
    %878 = vmatpush1.msra.mxu0 %v299
    %879 = vmatprep.subr.mxu0 0.0
    %880 = vmatpush1.msra.mxu0 %v298
    %881 = vmatprep.subr.mxu0 0.0
    %882 = vmatpush1.msra.mxu0 %v297
    %883 = vmatprep.subr.mxu0 0.0
    %884 = vmatpush1.msra.mxu0 %v296
    %885 = vmatprep.subr.mxu0 0.0
    %886 = vmatpush2.msra.mxu0 %v327
    %887 = vmatprep.subr.mxu0 0.0
    %888 = vmatpush2.msra.mxu0 %v326
    %889 = vmatprep.subr.mxu0 0.0
    %890 = vmatpush2.msra.mxu0 %v325
    %891 = vmatprep.subr.mxu0 0.0
    %892 = vmatpush2.msra.mxu0 %v324
    %893 = vmatprep.subr.mxu0 0.0
    %894 = vmatpush2.msra.mxu0 %v323
    %895 = vmatprep.subr.mxu0 0.0
    %896 = vmatpush2.msra.mxu0 %v322
    %897 = vmatprep.subr.mxu0 0.0
    %898 = vmatpush2.msra.mxu0 %v321
    %899 = vmatprep.subr.mxu0 0.0
    %900 = vmatpush2.msra.mxu0 %v320
    %901 = vmatprep.subr.mxu0 0.0
    %902 = vmatpush2.msra.mxu0 %v319
    %903 = vmatprep.subr.mxu0 0.0
    %904 = vmatpush2.msra.mxu0 %v318
    %905 = vmatprep.subr.mxu0 0.0
    %906 = vmatpush2.msra.mxu0 %v317
    %907 = vmatprep.subr.mxu0 0.0
    %908 = vmatpush2.msra.mxu0 %v316
    %909 = vmatprep.subr.mxu0 0.0
    %910 = vmatpush2.msra.mxu0 %v315
    %911 = vmatprep.subr.mxu0 0.0
    %912 = vmatpush2.msra.mxu0 %v314
    %913 = vmatprep.subr.mxu0 0.0
    %914 = vmatpush2.msra.mxu0 %v313
    %915 = vmatprep.subr.mxu0 0.0
    %916 = vmatpush2.msra.mxu0 %v312
    %917 = vmatprep.mubr.f32.mxu0 %v55
    %918 = vmatmul.mubr.f32.gmra.mxu0 %v54
    %v919 = vpop.f32.mrf.mxu0
    %v920 = vadd.f32 %v845, %v919
    %v921 = vpop.f32.mrf.mxu0
    %922 = vmatprep.mubr.f32.mxu0 %v71
    %923 = vmatmul.mubr.f32.gmra.mxu0 %v70
    %v924 = vpop.f32.mrf.mxu0
    %v925 = vadd.f32 %v850, %v924
    %v926 = vpop.f32.mrf.mxu0
    %927 = vdwg.mxu0
    %v928 = vmul.f32 %v920, 0.0625
    %v929 = vmul.f32 %v925, 0.0625
    %930 = vst [vmem:[#allocation7] sm:$0xff] %v928
    %931 = vst [vmem:[#allocation7 + $0x8] sm:$0xff] %v929
    // Predicated region
    $region18: #{tpu_custom_call.1} parent=1 // pred_check
      _
    $region19: #{tpu_custom_call.1} parent=1 // pred_check_branch
      %933 = sbr.rel (0) target = $region21
    $region20: #{tpu_custom_call.1} parent=1 // pred_region
      %s935 = ssub.s32 256, 256
      %936 = vsyncadd [#allocation4], %s935
      %s937 = sshll.u32 [#allocation7], 4
      %s938 = int_to_ptr.vmem [resolvable:$true] %s937
      %943 = dma.vmem_to_hbm [thread:$0]  %s938, 256, %s2, [#allocation4], 128, 128, 8
    $region21: #{tpu_custom_call.1} parent=1 // pred_fallthru
      _
    // Predicated region
    $region22: #{tpu_custom_call.1} parent=1 // pred_check
      _
    $region23: #{tpu_custom_call.1} parent=1 // pred_check_branch
      %945 = sbr.rel (0) target = $region25
    $region24: #{tpu_custom_call.1} parent=1 // pred_region
      %946 = dma.done [#allocation4], 256
    $region25: #{tpu_custom_call.1} parent=1 // pred_fallthru
      _
    %947 = vsyncpa [#allocation3], 1
    %948 = vsyncpa [#allocation6], 1
    %949 = vsyncpa [#allocation4], 1

</llo_original>
